<compile_context>
chip_gen: v7x
topology: tpu7x:2x2x1
jax: 0.10.0
libtpu: 0.0.40
codegen_flags: <defaults>
</compile_context>

<pallas_src>
import functools
import math

import jax
import jax.numpy as jnp
from jax.experimental import pallas as pl
from jax.experimental.pallas import tpu as pltpu


# ---------------------------------------------------------------------------
# Kernel
# ---------------------------------------------------------------------------
def _shortcut_kernel(x_ref, s_ref, o_ref, *, pad, c_in):
    # x_ref: (nb*C, H*W)          lane-dense 2-D input slab for this step
    # s_ref: (H*W, Hout*Wout)     0/1 stride-2 selection matrix (fetched once)
    # o_ref: (nb, C_out, Hout*Wout)
    nb, _, hw_out = o_ref.shape

    # Stride-2 subsample of H and W in one MXU contraction (MXU is otherwise
    # idle in this pure data-movement kernel; contraction is ~free per step).
    xs = jnp.dot(x_ref[...], s_ref[...], preferred_element_type=jnp.float32)
    xs = xs.reshape(nb, c_in, hw_out).astype(o_ref.dtype)

    if pad > 0:
        zeros = jnp.zeros((nb, pad, hw_out), dtype=o_ref.dtype)
        o_ref[:, :pad, :] = zeros            # leading pad channels only
        o_ref[:, pad + c_in:, :] = zeros     # trailing pad channels only
    o_ref[:, pad:pad + c_in, :] = xs         # data channels at offset `pad`


# ---------------------------------------------------------------------------
# Helpers
# ---------------------------------------------------------------------------
def _cdiv(a, b):
    return -(-a // b)


def _selection_matrix(h, w, h_out, w_out, dtype):
    """S[h*W + w, ho*Wout + wo] = 1  iff  h == 2*ho and w == 2*wo."""
    r = jnp.arange(h * w)
    c = jnp.arange(h_out * w_out)
    r_h, r_w = r // w, r % w
    c_h, c_w = c // w_out, c % w_out
    sel = (r_h[:, None] == 2 * c_h[None, :]) & (r_w[:, None] == 2 * c_w[None, :])
    return sel.astype(dtype)


def _pick_batch_block(n, c, per_n_bytes, target_bytes=6 << 20):
    """Batch elements per grid step: ~target_bytes of (in+out) per step,
    balanced blocks, (nb*c) rows kept sublane(8)-aligned unless one step
    covers the whole batch, and an even grid length when multi-step (clean
    split across v7x's two TensorCores; free on single-TC v5e/v6e)."""
    nb = max(1, min(n, target_bytes // max(per_n_bytes, 1)))
    if nb >= n:
        return n
    align = 8 // math.gcd(c, 8)                  # smallest nb with (nb*c) % 8 == 0
    steps = _cdiv(n, nb)
    if steps > 1 and steps % 2:
        steps += 1
    nb = _cdiv(_cdiv(n, steps), align) * align   # balance blocks, keep alignment
    return min(max(nb, align), n)


# ---------------------------------------------------------------------------
# Wrapper
# ---------------------------------------------------------------------------
def lambda_layer(x_nchw, planes):
    """Pallas equivalent of the resnet32 option-'A' shortcut LambdaLayer:
       lambda x: F.pad(x[:, :, ::2, ::2], (0,0,0,0, planes//4, planes//4), 'constant', 0)
    Input/output are NCHW, matching PyTorch exactly (no wrapper transposes)."""
    pad = planes // 4
    n, c, h, w = x_nchw.shape
    h_out, w_out = (h + 1) // 2, (w + 1) // 2       # ceil, matches PyTorch ::2
    c_out = c + 2 * pad
    hw, hw_out = h * w, h_out * w_out

    itemsize = jnp.dtype(x_nchw.dtype).itemsize
    per_n = (c * hw + c_out * hw_out) * itemsize
    nb = _pick_batch_block(n, c, per_n)
    grid = _cdiv(n, nb)

    x_flat = x_nchw.reshape(n * c, hw)               # free: NCHW is contiguous
    sel = _selection_matrix(h, w, h_out, w_out, x_nchw.dtype)

    kernel = functools.partial(_shortcut_kernel, pad=pad, c_in=c)
    out_flat = pl.pallas_call(
        kernel,
        out_shape=jax.ShapeDtypeStruct((n, c_out, hw_out), x_nchw.dtype),
        grid_spec=pltpu.PrefetchScalarGridSpec(
            num_scalar_prefetch=0,
            grid=(grid,),
            in_specs=[
                # Lane-dense 2-D input slab, blocked only on the batch rows.
                pl.BlockSpec((nb * c, hw), lambda i: (i, 0)),
                # Selection matrix: same block every step -> DMA'd once.
                pl.BlockSpec((hw, hw_out), lambda i: (0, 0)),
            ],
            out_specs=pl.BlockSpec((nb, c_out, hw_out), lambda i: (i, 0, 0)),
        ),
        compiler_params=pltpu.CompilerParams(
            dimension_semantics=("parallel",),
            vmem_limit_bytes=32 << 20,
        ),
    )(x_flat, sel)
    return out_flat.reshape(n, c_out, h_out, w_out)


# ---------------------------------------------------------------------------
# Self-test
# ---------------------------------------------------------------------------
if __name__ == "__main__":
    key = jax.random.PRNGKey(0)
    N, C, H, W = 2, 4, 16, 16
    planes = 8                      # -> channel pad of planes//4 = 2 per side
    x = jax.random.normal(key, (N, C, H, W), dtype=jnp.float32)

    out = jax.block_until_ready(lambda_layer(x, planes))

    # Pure-JAX reference of the PyTorch lambda (x[:, :, ::2, ::2] + channel pad).
    ref = jnp.pad(x[:, :, ::2, ::2],
                  ((0, 0), (planes // 4, planes // 4), (0, 0), (0, 0)))
    assert out.shape == ref.shape == (N, C + 2 * (planes // 4), H // 2, W // 2)
    assert out.dtype == ref.dtype
    # Pad channels are written directly as zeros -> must be exact.
    p = planes // 4
    assert bool(jnp.all(out[:, :p] == 0)) and bool(jnp.all(out[:, -p:] == 0))
    # The stride-2 selection is a 0/1 matmul on the MXU; for f32 inputs the
    # result is exact up to the MXU's f32 pass decomposition, so allow a small
    # tolerance (any wrong selection/pad would show as O(1) mismatches).
    assert jnp.allclose(out, ref, rtol=5e-3, atol=1e-6), \
        "Pallas kernel output mismatch vs reference"
    print("KERNEL_OK")
</pallas_src>

<mosaic_0001>
module attributes {stable_mosaic.version = 11 : i64} {
  func.func @_shortcut_kernel(%arg0: i32, %arg1: memref<8x256xf32, #tpu.memory_space<vmem>>, %arg2: memref<256x64xf32, #tpu.memory_space<vmem>>, %arg3: memref<2x8x64xf32, #tpu.memory_space<vmem>>) attributes {dimension_semantics = [#tpu.dimension_semantics<parallel>], iteration_bounds = array<i64: 1>, scalar_prefetch = 0 : i64, scratch_operands = 0 : i64, tpu.core_type = #tpu.core_type<tc>, window_params = [{transform_indices = @transform_0, window_bounds = array<i64: 8, 256>}, {pipeline_mode = #tpu.pipeline_mode<synchronous>, transform_indices = @transform_1, window_bounds = array<i64: 256, 64>}, {transform_indices = @transform_2, window_bounds = array<i64: 2, 8, 64>}]} {
    %c0 = arith.constant 0 : index
    %c0_0 = arith.constant 0 : index
    %0 = vector.load %arg1[%c0, %c0_0] : memref<8x256xf32, #tpu.memory_space<vmem>>, vector<8x256xf32>
    %c0_1 = arith.constant 0 : index
    %c0_2 = arith.constant 0 : index
    %1 = vector.load %arg2[%c0_1, %c0_2] : memref<256x64xf32, #tpu.memory_space<vmem>>, vector<256x64xf32>
    %cst = arith.constant dense<0.000000e+00> : vector<8x64xf32>
    %2 = tpu.matmul %0, %1, %cst {dimension_numbers = #tpu.dot_dimension_numbers<[1], [0], [0], [1], [0, 0, 1, 1], [], []>} : vector<8x256xf32>, vector<256x64xf32>, vector<8x64xf32> -> vector<8x64xf32>
    %3 = vector.shape_cast %2 : vector<8x64xf32> to vector<2x4x64xf32>
    %cst_3 = arith.constant 0.000000e+00 : f32
    %4 = vector.broadcast %cst_3 : f32 to vector<2x2x64xf32>
    %c0_4 = arith.constant 0 : index
    %c0_5 = arith.constant 0 : index
    %c0_6 = arith.constant 0 : index
    %5 = vector.load %arg3[%c0_4, %c0_5, %c0_6] : memref<2x8x64xf32, #tpu.memory_space<vmem>>, vector<2x2x64xf32>
    tpu.vector_store %arg3[%c0_4, %c0_5, %c0_6], %4 {strides = array<i32>} : memref<2x8x64xf32, #tpu.memory_space<vmem>>, vector<2x2x64xf32>,
    %c0_7 = arith.constant 0 : index
    %c6 = arith.constant 6 : index
    %c0_8 = arith.constant 0 : index
    %6 = vector.load %arg3[%c0_7, %c6, %c0_8] : memref<2x8x64xf32, #tpu.memory_space<vmem>>, vector<2x2x64xf32>
    tpu.vector_store %arg3[%c0_7, %c6, %c0_8], %4 {strides = array<i32>} : memref<2x8x64xf32, #tpu.memory_space<vmem>>, vector<2x2x64xf32>,
    %c0_9 = arith.constant 0 : index
    %c2 = arith.constant 2 : index
    %c0_10 = arith.constant 0 : index
    %7 = vector.load %arg3[%c0_9, %c2, %c0_10] : memref<2x8x64xf32, #tpu.memory_space<vmem>>, vector<2x4x64xf32>
    tpu.vector_store %arg3[%c0_9, %c2, %c0_10], %3 {strides = array<i32>} : memref<2x8x64xf32, #tpu.memory_space<vmem>>, vector<2x4x64xf32>,
    return
  }
  func.func @transform_0(%arg0: i32) -> (i32, i32) {
    %c0_i32 = arith.constant 0 : i32
    %c0_i32_0 = arith.constant 0 : i32
    return %arg0, %c0_i32 : i32, i32
  }
  func.func @transform_1(%arg0: i32) -> (i32, i32) {
    %c0_i32 = arith.constant 0 : i32
    %c0_i32_0 = arith.constant 0 : i32
    %c0_i32_1 = arith.constant 0 : i32
    return %c0_i32, %c0_i32_0 : i32, i32
  }
  func.func @transform_2(%arg0: i32) -> (i32, i32, i32) {
    %c0_i32 = arith.constant 0 : i32
    %c0_i32_0 = arith.constant 0 : i32
    %c0_i32_1 = arith.constant 0 : i32
    return %arg0, %c0_i32, %c0_i32_0 : i32, i32, i32
  }
}

</mosaic_0001>

<llo_original>
// kernel: tpu_custom_call.1
$region0: #{tpu_custom_call.1}
  #allocation0 [shape = 'u32[]', space=smem, size = 0x4, offset = 0x4, fixed_abs, tag = 'smem constant byte address 0x4 - core index']
  #allocation1 [shape = 'u32[144,128]{1,0:T(1,128)}', space=vmem, size = 0x12000, scoped, tag = 'internal scratch']
  %s0 = inlined_call_operand.vmem [shape: f32[8,256], index: 0, kind: input, shape index: {}]
  %s1 = inlined_call_operand.vmem [shape: f32[256,64], index: 1, kind: input, shape index: {}]
  %s2 = inlined_call_operand.hbm [shape: f32[2,8,64], index: 2, kind: output, shape index: {}]
  %s3 = sld [smem:[#allocation0]]
  $region18: #{tpu_custom_call.1} parent=0
    _
  %s5 = ssub.s32 1, %s3
  %s6 = scalar_select 0, %s5, %s3
  $region1: #{tpu_custom_call.1} parent=0
    #allocation2 [shape = 'u8[8192]{0}', space=vmem, size = 0x2000, scoped, tag = 'output window, operand 0, single buffered']
    #allocation3 [shape = 's32[1]{0}', space=sflag, size = 0x4, scoped, tag = 'scoped memory for tpu_custom_call.1']
    %7 = vsyncpa [#allocation3], 0
    // Predicated region
    $region2: #{tpu_custom_call.1} parent=1 // pred_check
      _
    $region3: #{tpu_custom_call.1} parent=1 // pred_check_branch
      %9 = sbr.rel (0) target = $region5
    $region4: #{tpu_custom_call.1} parent=1 // pred_region
      _
    $region5: #{tpu_custom_call.1} parent=1 // pred_fallthru
      _
    // Predicated region
    $region6: #{tpu_custom_call.1} parent=1 // pred_check
      _
    $region7: #{tpu_custom_call.1} parent=1 // pred_check_branch
      %11 = sbr.rel (0) target = $region9
    $region8: #{tpu_custom_call.1} parent=1 // pred_region
      _
    $region9: #{tpu_custom_call.1} parent=1 // pred_fallthru
      _
    %v12 = vld [vmem:[%s0] sm:$0xff]
    %v13 = vld [vmem:[%s0 + $0x8] sm:$0xff]
    %v14 = vld [vmem:[%s1] sm:$0xff]
    %v15 = vld [vmem:[%s1 + $0x8] sm:$0xff]
    %v16 = vld [vmem:[%s1 + $0x10] sm:$0xff]
    %v17 = vld [vmem:[%s1 + $0x18] sm:$0xff]
    %v18 = vld [vmem:[%s1 + $0x20] sm:$0xff]
    %v19 = vld [vmem:[%s1 + $0x28] sm:$0xff]
    %v20 = vld [vmem:[%s1 + $0x30] sm:$0xff]
    %v21 = vld [vmem:[%s1 + $0x38] sm:$0xff]
    %v22 = vld [vmem:[%s1 + $0x40] sm:$0xff]
    %v23 = vld [vmem:[%s1 + $0x48] sm:$0xff]
    %v24 = vld [vmem:[%s1 + $0x50] sm:$0xff]
    %v25 = vld [vmem:[%s1 + $0x58] sm:$0xff]
    %v26 = vld [vmem:[%s1 + $0x60] sm:$0xff]
    %v27 = vld [vmem:[%s1 + $0x68] sm:$0xff]
    %v28 = vld [vmem:[%s1 + $0x70] sm:$0xff]
    %v29 = vld [vmem:[%s1 + $0x78] sm:$0xff]
    %v30 = vld [vmem:[%s1 + $0x80] sm:$0xff]
    %v31 = vld [vmem:[%s1 + $0x88] sm:$0xff]
    %v32 = vld [vmem:[%s1 + $0x90] sm:$0xff]
    %v33 = vld [vmem:[%s1 + $0x98] sm:$0xff]
    %v34 = vld [vmem:[%s1 + $0xa0] sm:$0xff]
    %v35 = vld [vmem:[%s1 + $0xa8] sm:$0xff]
    %v36 = vld [vmem:[%s1 + $0xb0] sm:$0xff]
    %v37 = vld [vmem:[%s1 + $0xb8] sm:$0xff]
    %v38 = vld [vmem:[%s1 + $0xc0] sm:$0xff]
    %v39 = vld [vmem:[%s1 + $0xc8] sm:$0xff]
    %v40 = vld [vmem:[%s1 + $0xd0] sm:$0xff]
    %v41 = vld [vmem:[%s1 + $0xd8] sm:$0xff]
    %v42 = vld [vmem:[%s1 + $0xe0] sm:$0xff]
    %v43 = vld [vmem:[%s1 + $0xe8] sm:$0xff]
    %v44 = vld [vmem:[%s1 + $0xf0] sm:$0xff]
    %v45 = vld [vmem:[%s1 + $0xf8] sm:$0xff]
    %46 = vmatprep.subr.mxu0 0.0
    %47 = vmatpush1.msra.mxu0 %v14
    %48 = vmatprep.subr.mxu0 0.0
    %49 = vmatpush1.msra.mxu0 %v15
    %50 = vmatprep.subr.mxu0 0.0
    %51 = vmatpush1.msra.mxu0 %v16
    %52 = vmatprep.subr.mxu0 0.0
    %53 = vmatpush1.msra.mxu0 %v17
    %54 = vmatprep.subr.mxu0 0.0
    %55 = vmatpush1.msra.mxu0 %v18
    %56 = vmatprep.subr.mxu0 0.0
    %57 = vmatpush1.msra.mxu0 %v19
    %58 = vmatprep.subr.mxu0 0.0
    %59 = vmatpush1.msra.mxu0 %v20
    %60 = vmatprep.subr.mxu0 0.0
    %61 = vmatpush1.msra.mxu0 %v21
    %62 = vmatprep.subr.mxu0 0.0
    %63 = vmatpush1.msra.mxu0 %v22
    %64 = vmatprep.subr.mxu0 0.0
    %65 = vmatpush1.msra.mxu0 %v23
    %66 = vmatprep.subr.mxu0 0.0
    %67 = vmatpush1.msra.mxu0 %v24
    %68 = vmatprep.subr.mxu0 0.0
    %69 = vmatpush1.msra.mxu0 %v25
    %70 = vmatprep.subr.mxu0 0.0
    %71 = vmatpush1.msra.mxu0 %v26
    %72 = vmatprep.subr.mxu0 0.0
    %73 = vmatpush1.msra.mxu0 %v27
    %74 = vmatprep.subr.mxu0 0.0
    %75 = vmatpush1.msra.mxu0 %v28
    %76 = vmatprep.subr.mxu0 0.0
    %77 = vmatpush1.msra.mxu0 %v29
    %78 = vmatprep.subr.mxu0 0.0
    %79 = vmatpush1.msra.mxu0 %v30
    %80 = vmatprep.subr.mxu0 0.0
    %81 = vmatpush1.msra.mxu0 %v31
    %82 = vmatprep.subr.mxu0 0.0
    %83 = vmatpush1.msra.mxu0 %v32
    %84 = vmatprep.subr.mxu0 0.0
    %85 = vmatpush1.msra.mxu0 %v33
    %86 = vmatprep.subr.mxu0 0.0
    %87 = vmatpush1.msra.mxu0 %v34
    %88 = vmatprep.subr.mxu0 0.0
    %89 = vmatpush1.msra.mxu0 %v35
    %90 = vmatprep.subr.mxu0 0.0
    %91 = vmatpush1.msra.mxu0 %v36
    %92 = vmatprep.subr.mxu0 0.0
    %93 = vmatpush1.msra.mxu0 %v37
    %94 = vmatprep.subr.mxu0 0.0
    %95 = vmatpush1.msra.mxu0 %v38
    %96 = vmatprep.subr.mxu0 0.0
    %97 = vmatpush1.msra.mxu0 %v39
    %98 = vmatprep.subr.mxu0 0.0
    %99 = vmatpush1.msra.mxu0 %v40
    %100 = vmatprep.subr.mxu0 0.0
    %101 = vmatpush1.msra.mxu0 %v41
    %102 = vmatprep.subr.mxu0 0.0
    %103 = vmatpush1.msra.mxu0 %v42
    %104 = vmatprep.subr.mxu0 0.0
    %105 = vmatpush1.msra.mxu0 %v43
    %106 = vmatprep.subr.mxu0 0.0
    %107 = vmatpush1.msra.mxu0 %v44
    %108 = vmatprep.subr.mxu0 0.0
    %109 = vmatpush1.msra.mxu0 %v45
    %110 = vmatprep.mubr.f32.mxu0 %v13
    %111 = vmatmul.mubr.f32.gmra.mrb[0].mxu0 %v12
    %v112 = vpop.f32.mrb[0].mxu0
    %v113 = vadd.f32 0.0, %v112
    %v114 = vpop.f32.mrb[0].mxu0
    %115 = vdwg.mxu0
    %v117 = vcombine.high %v113, %v113
    %vm119 = vcmask 517120
    %120 = vst.msk [vmem:[#allocation2] sm:$0x3] %vm119, 0.0
    %121 = vst.msk [vmem:[#allocation2 + $0x8] sm:$0x3] %vm119, 0.0
    %122 = vst.msk [vmem:[#allocation2 + $0x6] sm:$0x3] %vm119, 0.0
    %123 = vst.msk [vmem:[#allocation2 + $0xe] sm:$0x3] %vm119, 0.0
    %vm124 = vcmask 519168
    %125 = vst.msk [vmem:[#allocation2 + $0x2] sm:$0xf] %vm124, %v113
    %126 = vst.msk [vmem:[#allocation2 + $0xa] sm:$0xf] %vm124, %v117
    // Predicated region
    $region10: #{tpu_custom_call.1} parent=1 // pred_check
      _
    $region11: #{tpu_custom_call.1} parent=1 // pred_check_branch
      %128 = sbr.rel (0) target = $region13
    $region12: #{tpu_custom_call.1} parent=1 // pred_region
      %s130 = ssub.s32 256, 256
      %131 = vsyncadd [#allocation3], %s130
      %s132 = sshll.u32 [#allocation2], 4
      %s133 = int_to_ptr.vmem [resolvable:$true] %s132
      %138 = dma.vmem_to_hbm [thread:$0]  %s133, 256, %s2, [#allocation3], 128, 128, 8
    $region13: #{tpu_custom_call.1} parent=1 // pred_fallthru
      _
    // Predicated region
    $region14: #{tpu_custom_call.1} parent=1 // pred_check
      _
    $region15: #{tpu_custom_call.1} parent=1 // pred_check_branch
      %140 = sbr.rel (0) target = $region17
    $region16: #{tpu_custom_call.1} parent=1 // pred_region
      %141 = dma.done [#allocation3], 256
    $region17: #{tpu_custom_call.1} parent=1 // pred_fallthru
      _
    %142 = vsyncpa [#allocation3], 1

</llo_original>
